<compile_context>
chip_gen: v6e
topology: v6e:2x2x1
jax: 0.10.0
libtpu: 0.0.40
codegen_flags: <defaults>
</compile_context>

<pallas_src>
import functools

import jax
import jax.numpy as jnp
from jax.experimental import pallas as pl
from jax.experimental.pallas import tpu as pltpu


def _round_up(x, m):
    return ((x + m - 1) // m) * m


def _local_smooth_kernel(pred_ref, mask_ref, inner_ref, o_ref, acc_ref, *,
                         shifts, pad, hw):
    """pred_ref/mask_ref: (TB, HWp) padded flat images; inner_ref: (1, hw)
    inner-region indicator; o_ref: (1, 1) total sum; acc_ref: (TB, hw)."""
    step = pl.program_id(0)

    @pl.when(step == 0)
    def _init():
        acc_ref[...] = jnp.zeros_like(acc_ref)

    # Center window: flat pixel q = h*W + w lives at padded column pad + q.
    pc = pred_ref[:, pad:pad + hw]
    mc = mask_ref[:, pad:pad + hw]

    s = jnp.zeros_like(pc)
    for d in shifts:                       # static python loop over 8 offsets
        pn = pred_ref[:, pad + d:pad + d + hw]
        mn = mask_ref[:, pad + d:pad + d + hw]
        diff = pc - pn
        s = s + mn * diff * diff

    # mask_center = mask * inner indicator; fold the indicator in once.
    acc_ref[...] += inner_ref[...] * mc * s

    @pl.when(step == pl.num_programs(0) - 1)
    def _finalize():
        o_ref[...] = jnp.sum(acc_ref[...], keepdims=True)


def local_smooth_loss(pred, mask, half_window_size=1, weight=1.0,
                      block_rows=512):
    """Pallas TPU implementation of LocalSmoothLoss.forward(pred, mask)."""
    N, C, H, W = pred.shape
    hws = half_window_size
    Hi, Wi = H - 2 * hws, W - 2 * hws
    assert Hi > 0 and Wi > 0, "window larger than image"

    B = N * C
    HW = H * W
    PAD = hws * W + hws                     # max |flat offset| = dy*W + dx
    HWr = _round_up(HW, 128)                # lane-dense working width
    HWp = _round_up(2 * PAD + HWr, 128)     # padded input width

    pred2 = pred.reshape(B, HW).astype(jnp.float32)
    mask2 = mask.reshape(B, HW).astype(jnp.float32)

    # Row tiling: pad B to a multiple of the (8-aligned) row tile.  Padded rows
    # have mask == 0 so they contribute nothing to the sum.
    B8 = _round_up(B, 8)
    TB = min(_round_up(block_rows, 8), B8)
    Bp = _round_up(B8, TB)

    col_pad = (PAD, HWp - PAD - HW)
    pred_p = jnp.pad(pred2, ((0, Bp - B), col_pad))
    mask_p = jnp.pad(mask2, ((0, Bp - B), col_pad))

    # Inner-region indicator over the (unpadded) flat H*W positions.
    hh = jnp.arange(H)
    ww = jnp.arange(W)
    inner2d = ((hh[:, None] >= hws) & (hh[:, None] < H - hws)
               & (ww[None, :] >= hws) & (ww[None, :] < W - hws))
    inner = jnp.pad(inner2d.astype(jnp.float32).reshape(1, HW),
                    ((0, 0), (0, HWr - HW)))

    # Neighbour offsets in flat index space; the (0,0) term is exactly zero.
    shifts = tuple(dy * W + dx
                   for dy in range(-hws, hws + 1)
                   for dx in range(-hws, hws + 1)
                   if not (dy == 0 and dx == 0))

    kernel = functools.partial(_local_smooth_kernel,
                               shifts=shifts, pad=PAD, hw=HWr)
    total = pl.pallas_call(
        kernel,
        out_shape=jax.ShapeDtypeStruct((1, 1), jnp.float32),
        grid=(Bp // TB,),
        in_specs=[
            pl.BlockSpec((TB, HWp), lambda i: (i, 0)),
            pl.BlockSpec((TB, HWp), lambda i: (i, 0)),
            pl.BlockSpec((1, HWr), lambda i: (0, 0)),
        ],
        out_specs=pl.BlockSpec((1, 1), lambda i: (0, 0)),
        scratch_shapes=[pltpu.VMEM((TB, HWr), jnp.float32)],
        compiler_params=pltpu.CompilerParams(
            dimension_semantics=("arbitrary",)),  # grid axis is a reduction
    )(pred_p, mask_p, inner)[0, 0]

    # Sum of the 9 per-offset means, then the module's fixed normalization.
    denom = float(N * C * Hi * Wi)
    return weight * total / denom / (8.0 * C)


def local_smooth_loss_ref(pred, mask, half_window_size=1, weight=1.0):
    """Pure-JAX transcription of the PyTorch forward (validation only)."""
    N, C, H, W = pred.shape
    hws = half_window_size
    mc = mask[:, :, hws:H - hws, hws:W - hws]
    rc = pred[:, :, hws:H - hws, hws:W - hws]
    total = jnp.float32(0.0)
    for dy in range(-hws, hws + 1):
        for dx in range(-hws, hws + 1):
            rn = pred[:, :, hws + dy:H - hws + dy, hws + dx:W - hws + dx]
            mn = mask[:, :, hws + dy:H - hws + dy, hws + dx:W - hws + dx]
            total = total + jnp.mean(mn * mc * (rc - rn) ** 2)
    return weight * total / (8.0 * C)


if __name__ == "__main__":
    key = jax.random.PRNGKey(0)
    k_pred, k_mask = jax.random.split(key)

    N, C, H, W = 2, 4, 16, 16
    pred = jax.random.normal(k_pred, (N, C, H, W), jnp.float32)
    mask = (jax.random.uniform(k_mask, (N, C, H, W)) > 0.3).astype(jnp.float32)

    loss = jax.jit(local_smooth_loss)(pred, mask)
    jax.block_until_ready(loss)

    ref = local_smooth_loss_ref(pred, mask)
    assert loss.shape == () and bool(jnp.isfinite(loss))
    assert jnp.allclose(loss, ref, rtol=1e-4, atol=1e-6), (float(loss), float(ref))
    print("KERNEL_OK")
</pallas_src>

<mosaic_0001>
module attributes {stable_mosaic.version = 11 : i64} {
  func.func @_local_smooth_kernel(%arg0: i32, %arg1: memref<8x384xf32, #tpu.memory_space<vmem>>, %arg2: memref<8x384xf32, #tpu.memory_space<vmem>>, %arg3: memref<1x256xf32, #tpu.memory_space<vmem>>, %arg4: memref<1x1xf32, #tpu.memory_space<vmem>>, %arg5: memref<8x256xf32, #tpu.memory_space<vmem>>) attributes {dimension_semantics = [#tpu.dimension_semantics<arbitrary>], iteration_bounds = array<i64: 1>, scalar_prefetch = 0 : i64, scratch_operands = 1 : i64, tpu.core_type = #tpu.core_type<tc>, window_params = [{transform_indices = @transform_0, window_bounds = array<i64: 8, 384>}, {transform_indices = @transform_1, window_bounds = array<i64: 8, 384>}, {pipeline_mode = #tpu.pipeline_mode<synchronous>, transform_indices = @transform_2, window_bounds = array<i64: 1, 256>}, {pipeline_mode = #tpu.pipeline_mode<synchronous>, transform_indices = @transform_3, window_bounds = array<i64: 1, 1>}]} {
    %c0_i32 = arith.constant 0 : i32
    %0 = arith.cmpi eq, %arg0, %c0_i32 : i32
    %1 = arith.extui %0 : i1 to i32
    %c0_i32_0 = arith.constant 0 : i32
    %2 = arith.cmpi ne, %1, %c0_i32_0 : i32
    scf.if %2 {
      %cst_36 = arith.constant 0.000000e+00 : f32
      %64 = vector.broadcast %cst_36 : f32 to vector<8x256xf32>
      %c0_37 = arith.constant 0 : index
      %c0_38 = arith.constant 0 : index
      %65 = vector.load %arg5[%c0_37, %c0_38] : memref<8x256xf32, #tpu.memory_space<vmem>>, vector<8x256xf32>
      tpu.vector_store %arg5[%c0_37, %c0_38], %64 {strides = array<i32>} : memref<8x256xf32, #tpu.memory_space<vmem>>, vector<8x256xf32>,
    } else {
    }
    %c0 = arith.constant 0 : index
    %c17 = arith.constant 17 : index
    %3 = vector.load %arg1[%c0, %c17] : memref<8x384xf32, #tpu.memory_space<vmem>>, vector<8x256xf32>
    %c0_1 = arith.constant 0 : index
    %c17_2 = arith.constant 17 : index
    %4 = vector.load %arg2[%c0_1, %c17_2] : memref<8x384xf32, #tpu.memory_space<vmem>>, vector<8x256xf32>
    %cst = arith.constant 0.000000e+00 : f32
    %5 = vector.broadcast %cst : f32 to vector<8x256xf32>
    %c0_3 = arith.constant 0 : index
    %c0_4 = arith.constant 0 : index
    %6 = vector.load %arg1[%c0_3, %c0_4] : memref<8x384xf32, #tpu.memory_space<vmem>>, vector<8x256xf32>
    %c0_5 = arith.constant 0 : index
    %c0_6 = arith.constant 0 : index
    %7 = vector.load %arg2[%c0_5, %c0_6] : memref<8x384xf32, #tpu.memory_space<vmem>>, vector<8x256xf32>
    %8 = arith.subf %3, %6 : vector<8x256xf32>
    %9 = arith.mulf %7, %8 : vector<8x256xf32>
    %10 = arith.mulf %9, %8 : vector<8x256xf32>
    %11 = arith.addf %5, %10 : vector<8x256xf32>
    %c0_7 = arith.constant 0 : index
    %c1 = arith.constant 1 : index
    %12 = vector.load %arg1[%c0_7, %c1] : memref<8x384xf32, #tpu.memory_space<vmem>>, vector<8x256xf32>
    %c0_8 = arith.constant 0 : index
    %c1_9 = arith.constant 1 : index
    %13 = vector.load %arg2[%c0_8, %c1_9] : memref<8x384xf32, #tpu.memory_space<vmem>>, vector<8x256xf32>
    %14 = arith.subf %3, %12 : vector<8x256xf32>
    %15 = arith.mulf %13, %14 : vector<8x256xf32>
    %16 = arith.mulf %15, %14 : vector<8x256xf32>
    %17 = arith.addf %11, %16 : vector<8x256xf32>
    %c0_10 = arith.constant 0 : index
    %c2 = arith.constant 2 : index
    %18 = vector.load %arg1[%c0_10, %c2] : memref<8x384xf32, #tpu.memory_space<vmem>>, vector<8x256xf32>
    %c0_11 = arith.constant 0 : index
    %c2_12 = arith.constant 2 : index
    %19 = vector.load %arg2[%c0_11, %c2_12] : memref<8x384xf32, #tpu.memory_space<vmem>>, vector<8x256xf32>
    %20 = arith.subf %3, %18 : vector<8x256xf32>
    %21 = arith.mulf %19, %20 : vector<8x256xf32>
    %22 = arith.mulf %21, %20 : vector<8x256xf32>
    %23 = arith.addf %17, %22 : vector<8x256xf32>
    %c0_13 = arith.constant 0 : index
    %c16 = arith.constant 16 : index
    %24 = vector.load %arg1[%c0_13, %c16] : memref<8x384xf32, #tpu.memory_space<vmem>>, vector<8x256xf32>
    %c0_14 = arith.constant 0 : index
    %c16_15 = arith.constant 16 : index
    %25 = vector.load %arg2[%c0_14, %c16_15] : memref<8x384xf32, #tpu.memory_space<vmem>>, vector<8x256xf32>
    %26 = arith.subf %3, %24 : vector<8x256xf32>
    %27 = arith.mulf %25, %26 : vector<8x256xf32>
    %28 = arith.mulf %27, %26 : vector<8x256xf32>
    %29 = arith.addf %23, %28 : vector<8x256xf32>
    %c0_16 = arith.constant 0 : index
    %c18 = arith.constant 18 : index
    %30 = vector.load %arg1[%c0_16, %c18] : memref<8x384xf32, #tpu.memory_space<vmem>>, vector<8x256xf32>
    %c0_17 = arith.constant 0 : index
    %c18_18 = arith.constant 18 : index
    %31 = vector.load %arg2[%c0_17, %c18_18] : memref<8x384xf32, #tpu.memory_space<vmem>>, vector<8x256xf32>
    %32 = arith.subf %3, %30 : vector<8x256xf32>
    %33 = arith.mulf %31, %32 : vector<8x256xf32>
    %34 = arith.mulf %33, %32 : vector<8x256xf32>
    %35 = arith.addf %29, %34 : vector<8x256xf32>
    %c0_19 = arith.constant 0 : index
    %c32 = arith.constant 32 : index
    %36 = vector.load %arg1[%c0_19, %c32] : memref<8x384xf32, #tpu.memory_space<vmem>>, vector<8x256xf32>
    %c0_20 = arith.constant 0 : index
    %c32_21 = arith.constant 32 : index
    %37 = vector.load %arg2[%c0_20, %c32_21] : memref<8x384xf32, #tpu.memory_space<vmem>>, vector<8x256xf32>
    %38 = arith.subf %3, %36 : vector<8x256xf32>
    %39 = arith.mulf %37, %38 : vector<8x256xf32>
    %40 = arith.mulf %39, %38 : vector<8x256xf32>
    %41 = arith.addf %35, %40 : vector<8x256xf32>
    %c0_22 = arith.constant 0 : index
    %c33 = arith.constant 33 : index
    %42 = vector.load %arg1[%c0_22, %c33] : memref<8x384xf32, #tpu.memory_space<vmem>>, vector<8x256xf32>
    %c0_23 = arith.constant 0 : index
    %c33_24 = arith.constant 33 : index
    %43 = vector.load %arg2[%c0_23, %c33_24] : memref<8x384xf32, #tpu.memory_space<vmem>>, vector<8x256xf32>
    %44 = arith.subf %3, %42 : vector<8x256xf32>
    %45 = arith.mulf %43, %44 : vector<8x256xf32>
    %46 = arith.mulf %45, %44 : vector<8x256xf32>
    %47 = arith.addf %41, %46 : vector<8x256xf32>
    %c0_25 = arith.constant 0 : index
    %c34 = arith.constant 34 : index
    %48 = vector.load %arg1[%c0_25, %c34] : memref<8x384xf32, #tpu.memory_space<vmem>>, vector<8x256xf32>
    %c0_26 = arith.constant 0 : index
    %c34_27 = arith.constant 34 : index
    %49 = vector.load %arg2[%c0_26, %c34_27] : memref<8x384xf32, #tpu.memory_space<vmem>>, vector<8x256xf32>
    %50 = arith.subf %3, %48 : vector<8x256xf32>
    %51 = arith.mulf %49, %50 : vector<8x256xf32>
    %52 = arith.mulf %51, %50 : vector<8x256xf32>
    %53 = arith.addf %47, %52 : vector<8x256xf32>
    %c0_28 = arith.constant 0 : index
    %c0_29 = arith.constant 0 : index
    %54 = vector.load %arg5[%c0_28, %c0_29] : memref<8x256xf32, #tpu.memory_space<vmem>>, vector<8x256xf32>
    %c0_30 = arith.constant 0 : index
    %c0_31 = arith.constant 0 : index
    %55 = vector.load %arg3[%c0_30, %c0_31] : memref<1x256xf32, #tpu.memory_space<vmem>>, vector<1x256xf32>
    %56 = vector.broadcast %55 : vector<1x256xf32> to vector<8x256xf32>
    %57 = arith.mulf %56, %4 : vector<8x256xf32>
    %58 = arith.mulf %57, %53 : vector<8x256xf32>
    %59 = arith.addf %54, %58 : vector<8x256xf32>
    %c0_32 = arith.constant 0 : index
    %c0_33 = arith.constant 0 : index
    %60 = vector.load %arg5[%c0_32, %c0_33] : memref<8x256xf32, #tpu.memory_space<vmem>>, vector<8x256xf32>
    tpu.vector_store %arg5[%c0_32, %c0_33], %59 {strides = array<i32>} : memref<8x256xf32, #tpu.memory_space<vmem>>, vector<8x256xf32>,
    %c0_i32_34 = arith.constant 0 : i32
    %61 = arith.cmpi eq, %arg0, %c0_i32_34 : i32
    %62 = arith.extui %61 : i1 to i32
    %c0_i32_35 = arith.constant 0 : i32
    %63 = arith.cmpi ne, %62, %c0_i32_35 : i32
    scf.if %63 {
      %c0_36 = arith.constant 0 : index
      %c0_37 = arith.constant 0 : index
      %64 = vector.load %arg5[%c0_36, %c0_37] : memref<8x256xf32, #tpu.memory_space<vmem>>, vector<8x256xf32>
      %65 = vector.shape_cast %64 : vector<8x256xf32> to vector<1x8x256xf32>
      %cst_38 = arith.constant dense<0.000000e+00> : vector<1xf32>
      %66 = vector.multi_reduction <add>, %65, %cst_38 [1, 2] : vector<1x8x256xf32> to vector<1xf32>
      %67 = vector.shape_cast %66 : vector<1xf32> to vector<1x1x1xf32>
      %68 = vector.extract %67[0, 0, 0] : f32 from vector<1x1x1xf32>
      %69 = vector.broadcast %68 : f32 to vector<1x1xf32>
      %c0_39 = arith.constant 0 : index
      %c0_40 = arith.constant 0 : index
      %70 = vector.load %arg4[%c0_39, %c0_40] : memref<1x1xf32, #tpu.memory_space<vmem>>, vector<1x1xf32>
      tpu.vector_store %arg4[%c0_39, %c0_40], %69 {strides = array<i32>} : memref<1x1xf32, #tpu.memory_space<vmem>>, vector<1x1xf32>,
    } else {
    }
    return
  }
  func.func @transform_0(%arg0: i32) -> (i32, i32) {
    %c0_i32 = arith.constant 0 : i32
    %c0_i32_0 = arith.constant 0 : i32
    return %arg0, %c0_i32 : i32, i32
  }
  func.func @transform_1(%arg0: i32) -> (i32, i32) {
    %c0_i32 = arith.constant 0 : i32
    %c0_i32_0 = arith.constant 0 : i32
    return %arg0, %c0_i32 : i32, i32
  }
  func.func @transform_2(%arg0: i32) -> (i32, i32) {
    %c0_i32 = arith.constant 0 : i32
    %c0_i32_0 = arith.constant 0 : i32
    %c0_i32_1 = arith.constant 0 : i32
    return %c0_i32, %c0_i32_0 : i32, i32
  }
  func.func @transform_3(%arg0: i32) -> (i32, i32) {
    %c0_i32 = arith.constant 0 : i32
    %c0_i32_0 = arith.constant 0 : i32
    %c0_i32_1 = arith.constant 0 : i32
    return %c0_i32, %c0_i32_0 : i32, i32
  }
}

</mosaic_0001>

<llo_original>
// kernel: local_smooth_loss.1
$region0: #{local_smooth_loss.1}
  #allocation0 [shape = 'u32[]', space=smem, size = 0x4, offset = 0x4, fixed_abs, tag = 'smem constant byte address 0x4 - core index']
  #allocation1 [shape = 'u32[144,128]{1,0:T(1,128)}', space=vmem, size = 0x12000, scoped, tag = 'internal scratch']
  #allocation2 [shape = 'f32[8,256]{1,0:T(8,128)}', space=vmem, size = 0x2000, scoped, tag = 'scratch operand']
  %s0 = inlined_call_operand.vmem [shape: f32[8,384], index: 0, kind: input, shape index: {}]
  %s1 = inlined_call_operand.vmem [shape: f32[8,384], index: 1, kind: input, shape index: {}]
  %s2 = inlined_call_operand.vmem [shape: f32[1,256], index: 2, kind: input, shape index: {}]
  %s3 = inlined_call_operand.hbm [shape: f32[1,1], index: 3, kind: output, shape index: {}]
  %s4 = sld [smem:[#allocation0]]
  $region30: #{local_smooth_loss.1} parent=0
    _
  %s6 = ssub.s32 1, %s4
  %s7 = scalar_select 0, %s6, %s4
  $region1: #{local_smooth_loss.1} parent=0
    #allocation3 [shape = 'u8[512]{0}', space=vmem, size = 0x400, scoped, tag = 'output window, operand 0, single buffered']
    #allocation4 [shape = 's32[1]{0}', space=sflag, size = 0x4, scoped, tag = 'scoped memory for local_smooth_loss.1']
    %8 = vsyncpa [#allocation4], 0
    // Predicated region
    $region2: #{local_smooth_loss.1} parent=1 // pred_check
      _
    $region3: #{local_smooth_loss.1} parent=1 // pred_check_branch
      %10 = sbr.rel (0) target = $region5
    $region4: #{local_smooth_loss.1} parent=1 // pred_region
      _
    $region5: #{local_smooth_loss.1} parent=1 // pred_fallthru
      _
    // Predicated region
    $region6: #{local_smooth_loss.1} parent=1 // pred_check
      _
    $region7: #{local_smooth_loss.1} parent=1 // pred_check_branch
      %12 = sbr.rel (0) target = $region9
    $region8: #{local_smooth_loss.1} parent=1 // pred_region
      _
    $region9: #{local_smooth_loss.1} parent=1 // pred_fallthru
      _
    // Predicated region
    $region10: #{local_smooth_loss.1} parent=1 // pred_check
      _
    $region11: #{local_smooth_loss.1} parent=1 // pred_check_branch
      %14 = sbr.rel (0) target = $region13
    $region12: #{local_smooth_loss.1} parent=1 // pred_region
      _
    $region13: #{local_smooth_loss.1} parent=1 // pred_fallthru
      _
    %p15 = scmp.eq.s32.totalorder 0, 0
    // Predicated region
    $region14: #{local_smooth_loss.1} parent=1 // pred_check
      %p16 = pneg %p15
    $region15: #{local_smooth_loss.1} parent=1 // pred_check_branch
      %18 = sbr.rel (%p16) target = $region17
    $region16: #{local_smooth_loss.1} parent=1 // pred_region
      %19 = vst [vmem:[#allocation2] sm:$0xff] 0.0
      %20 = vst [vmem:[#allocation2 + $0x8] sm:$0xff] 0.0
    $region17: #{local_smooth_loss.1} parent=1 // pred_fallthru
      _
    %v21 = vld [vmem:[%s0] sm:$0xff]
    %v22 = vld [vmem:[%s0 + $0x8] sm:$0xff]
    %v23 = vld [vmem:[%s0 + $0x10] sm:$0xff]
    %v24 = vld [vmem:[%s1] sm:$0xff]
    %v25 = vld [vmem:[%s1 + $0x8] sm:$0xff]
    %v26 = vld [vmem:[%s1 + $0x10] sm:$0xff]
    %v27 = vld [vmem:[%s0] sm:$0xff]
    %v28 = vld [vmem:[%s0 + $0x8] sm:$0xff]
    %v29 = vld [vmem:[%s1] sm:$0xff]
    %v30 = vld [vmem:[%s1 + $0x8] sm:$0xff]
    %33 = vrot.lane.b32.xlu0 %v27, 17
    %v34 = vpop.permute.xlu0 %33
    %35 = vrot.lane.b32.xlu0 %v28, 17
    %v36 = vpop.permute.xlu0 %35
    %vm37 = vcmask 138240
    %v38 = vsel %vm37, %v34, %v36
    %v42 = vsub.f32 %v21, %v34
    %v43 = vsub.f32 %v22, %v38
    %v44 = vsub.f32 %v23, %v36
    %48 = vrot.lane.b32.xlu0 %v42, 111
    %v49 = vpop.permute.xlu0 %48
    %50 = vrot.lane.b32.xlu0 %v43, 111
    %v51 = vpop.permute.xlu0 %50
    %52 = vrot.lane.b32.xlu0 %v44, 111
    %v53 = vpop.permute.xlu0 %52
    %vm54 = vcmask 908288
    %v55 = vsel %vm54, %v49, %v51
    %v56 = vsel %vm54, %v51, %v53
    %v59 = vmul.f32 %v29, %v55
    %v60 = vmul.f32 %v30, %v56
    %v61 = vmul.f32 %v59, %v55
    %v62 = vmul.f32 %v60, %v56
    %v63 = vadd.f32 %v61, 0.0
    %v64 = vadd.f32 %v62, 0.0
    %68 = vrot.lane.b32.xlu0 %v21, 16
    %v69 = vpop.permute.xlu0 %68
    %70 = vrot.lane.b32.xlu0 %v22, 16
    %v71 = vpop.permute.xlu0 %70
    %72 = vrot.lane.b32.xlu0 %v23, 16
    %v73 = vpop.permute.xlu0 %72
    %vm74 = vcmask 130048
    %v75 = vsel %vm74, %v69, %v71
    %v76 = vsel %vm74, %v71, %v73
    %v80 = vsub.f32 %v21, %v69
    %v81 = vsub.f32 %v22, %v75
    %v82 = vsub.f32 %v23, %v76
    %86 = vrot.lane.b32.xlu0 %v80, 112
    %v87 = vpop.permute.xlu0 %86
    %88 = vrot.lane.b32.xlu0 %v81, 112
    %v89 = vpop.permute.xlu0 %88
    %90 = vrot.lane.b32.xlu0 %v82, 112
    %v91 = vpop.permute.xlu0 %90
    %vm92 = vcmask 916480
    %v93 = vsel %vm92, %v87, %v89
    %v94 = vsel %vm92, %v89, %v91
    %v98 = vmul.f32 %v24, %v93
    %v99 = vmul.f32 %v25, %v94
    %v100 = vmul.f32 %v26, %v91
    %v101 = vmul.f32 %v98, %v93
    %v102 = vmul.f32 %v99, %v94
    %v103 = vmul.f32 %v100, %v91
    %107 = vrot.lane.b32.xlu0 %v101, 127
    %v108 = vpop.permute.xlu0 %107
    %109 = vrot.lane.b32.xlu0 %v102, 127
    %v110 = vpop.permute.xlu0 %109
    %111 = vrot.lane.b32.xlu0 %v103, 127
    %v112 = vpop.permute.xlu0 %111
    %vm113 = vcmask 1039360
    %v114 = vsel %vm113, %v108, %v110
    %v115 = vsel %vm113, %v110, %v112
    %v118 = vadd.f32 %v63, %v114
    %v119 = vadd.f32 %v64, %v115
    %120 = vrot.lane.b32.xlu0 %v21, 15
    %v121 = vpop.permute.xlu0 %120
    %122 = vrot.lane.b32.xlu0 %v22, 15
    %v123 = vpop.permute.xlu0 %122
    %124 = vrot.lane.b32.xlu0 %v23, 15
    %v125 = vpop.permute.xlu0 %124
    %vm126 = vcmask 121856
    %v127 = vsel %vm126, %v121, %v123
    %v128 = vsel %vm126, %v123, %v125
    %v132 = vsub.f32 %v21, %v121
    %v133 = vsub.f32 %v22, %v127
    %v134 = vsub.f32 %v23, %v128
    %138 = vrot.lane.b32.xlu0 %v132, 113
    %v139 = vpop.permute.xlu0 %138
    %140 = vrot.lane.b32.xlu0 %v133, 113
    %v141 = vpop.permute.xlu0 %140
    %142 = vrot.lane.b32.xlu0 %v134, 113
    %v143 = vpop.permute.xlu0 %142
    %vm144 = vcmask 924672
    %v145 = vsel %vm144, %v139, %v141
    %v146 = vsel %vm144, %v141, %v143
    %v150 = vmul.f32 %v24, %v145
    %v151 = vmul.f32 %v25, %v146
    %v152 = vmul.f32 %v26, %v143
    %v153 = vmul.f32 %v150, %v145
    %v154 = vmul.f32 %v151, %v146
    %v155 = vmul.f32 %v152, %v143
    %159 = vrot.lane.b32.xlu0 %v153, 126
    %v160 = vpop.permute.xlu0 %159
    %161 = vrot.lane.b32.xlu0 %v154, 126
    %v162 = vpop.permute.xlu0 %161
    %163 = vrot.lane.b32.xlu0 %v155, 126
    %v164 = vpop.permute.xlu0 %163
    %vm165 = vcmask 1031168
    %v166 = vsel %vm165, %v160, %v162
    %v167 = vsel %vm165, %v162, %v164
    %v170 = vadd.f32 %v118, %v166
    %v171 = vadd.f32 %v119, %v167
    %172 = vrot.lane.b32.xlu0 %v21, 1
    %v173 = vpop.permute.xlu0 %172
    %174 = vrot.lane.b32.xlu0 %v22, 1
    %v175 = vpop.permute.xlu0 %174
    %176 = vrot.lane.b32.xlu0 %v23, 1
    %v177 = vpop.permute.xlu0 %176
    %vm178 = vcmask 7168
    %v179 = vsel %vm178, %v173, %v175
    %v180 = vsel %vm178, %v175, %v177
    %v184 = vsub.f32 %v21, %v173
    %v185 = vsub.f32 %v22, %v179
    %v186 = vsub.f32 %v23, %v180
    %190 = vrot.lane.b32.xlu0 %v184, 127
    %v191 = vpop.permute.xlu0 %190
    %192 = vrot.lane.b32.xlu0 %v185, 127
    %v193 = vpop.permute.xlu0 %192
    %194 = vrot.lane.b32.xlu0 %v186, 127
    %v195 = vpop.permute.xlu0 %194
    %v196 = vsel %vm113, %v191, %v193
    %v197 = vsel %vm113, %v193, %v195
    %v201 = vmul.f32 %v24, %v196
    %v202 = vmul.f32 %v25, %v197
    %v203 = vmul.f32 %v26, %v195
    %v204 = vmul.f32 %v201, %v196
    %v205 = vmul.f32 %v202, %v197
    %v206 = vmul.f32 %v203, %v195
    %210 = vrot.lane.b32.xlu0 %v204, 112
    %v211 = vpop.permute.xlu0 %210
    %212 = vrot.lane.b32.xlu0 %v205, 112
    %v213 = vpop.permute.xlu0 %212
    %214 = vrot.lane.b32.xlu0 %v206, 112
    %v215 = vpop.permute.xlu0 %214
    %v216 = vsel %vm92, %v211, %v213
    %v217 = vsel %vm92, %v213, %v215
    %v220 = vadd.f32 %v170, %v216
    %v221 = vadd.f32 %v171, %v217
    %222 = vrot.lane.b32.xlu0 %v21, 127
    %v223 = vpop.permute.xlu0 %222
    %224 = vrot.lane.b32.xlu0 %v22, 127
    %v225 = vpop.permute.xlu0 %224
    %226 = vrot.lane.b32.xlu0 %v23, 127
    %v227 = vpop.permute.xlu0 %226
    %v228 = vsel %vm113, %v223, %v225
    %v229 = vsel %vm113, %v225, %v227
    %v233 = vsub.f32 %v21, %v228
    %v234 = vsub.f32 %v22, %v229
    %v235 = vsub.f32 %v23, %v227
    %239 = vrot.lane.b32.xlu0 %v233, 1
    %v240 = vpop.permute.xlu0 %239
    %241 = vrot.lane.b32.xlu0 %v234, 1
    %v242 = vpop.permute.xlu0 %241
    %243 = vrot.lane.b32.xlu0 %v235, 1
    %v244 = vpop.permute.xlu0 %243
    %v245 = vsel %vm178, %v240, %v242
    %v246 = vsel %vm178, %v242, %v244
    %v250 = vmul.f32 %v24, %v240
    %v251 = vmul.f32 %v25, %v245
    %v252 = vmul.f32 %v26, %v246
    %v253 = vmul.f32 %v250, %v240
    %v254 = vmul.f32 %v251, %v245
    %v255 = vmul.f32 %v252, %v246
    %259 = vrot.lane.b32.xlu0 %v253, 110
    %v260 = vpop.permute.xlu0 %259
    %261 = vrot.lane.b32.xlu0 %v254, 110
    %v262 = vpop.permute.xlu0 %261
    %263 = vrot.lane.b32.xlu0 %v255, 110
    %v264 = vpop.permute.xlu0 %263
    %vm265 = vcmask 900096
    %v266 = vsel %vm265, %v260, %v262
    %v267 = vsel %vm265, %v262, %v264
    %v270 = vadd.f32 %v220, %v266
    %v271 = vadd.f32 %v221, %v267
    %272 = vrot.lane.b32.xlu0 %v21, 113
    %v273 = vpop.permute.xlu0 %272
    %274 = vrot.lane.b32.xlu0 %v22, 113
    %v275 = vpop.permute.xlu0 %274
    %276 = vrot.lane.b32.xlu0 %v23, 113
    %v277 = vpop.permute.xlu0 %276
    %v278 = vsel %vm144, %v273, %v275
    %v279 = vsel %vm144, %v275, %v277
    %v283 = vsub.f32 %v21, %v278
    %v284 = vsub.f32 %v22, %v279
    %v285 = vsub.f32 %v23, %v277
    %289 = vrot.lane.b32.xlu0 %v283, 15
    %v290 = vpop.permute.xlu0 %289
    %291 = vrot.lane.b32.xlu0 %v284, 15
    %v292 = vpop.permute.xlu0 %291
    %293 = vrot.lane.b32.xlu0 %v285, 15
    %v294 = vpop.permute.xlu0 %293
    %v295 = vsel %vm126, %v290, %v292
    %v296 = vsel %vm126, %v292, %v294
    %v300 = vmul.f32 %v24, %v290
    %v301 = vmul.f32 %v25, %v295
    %v302 = vmul.f32 %v26, %v296
    %v303 = vmul.f32 %v300, %v290
    %v304 = vmul.f32 %v301, %v295
    %v305 = vmul.f32 %v302, %v296
    %309 = vrot.lane.b32.xlu0 %v303, 96
    %v310 = vpop.permute.xlu0 %309
    %311 = vrot.lane.b32.xlu0 %v304, 96
    %v312 = vpop.permute.xlu0 %311
    %313 = vrot.lane.b32.xlu0 %v305, 96
    %v314 = vpop.permute.xlu0 %313
    %vm315 = vcmask 785408
    %v316 = vsel %vm315, %v310, %v312
    %v317 = vsel %vm315, %v312, %v314
    %v320 = vadd.f32 %v270, %v316
    %v321 = vadd.f32 %v271, %v317
    %322 = vrot.lane.b32.xlu0 %v21, 112
    %v323 = vpop.permute.xlu0 %322
    %324 = vrot.lane.b32.xlu0 %v22, 112
    %v325 = vpop.permute.xlu0 %324
    %326 = vrot.lane.b32.xlu0 %v23, 112
    %v327 = vpop.permute.xlu0 %326
    %v328 = vsel %vm92, %v323, %v325
    %v329 = vsel %vm92, %v325, %v327
    %v333 = vsub.f32 %v21, %v328
    %v334 = vsub.f32 %v22, %v329
    %v335 = vsub.f32 %v23, %v327
    %339 = vrot.lane.b32.xlu0 %v333, 16
    %v340 = vpop.permute.xlu0 %339
    %341 = vrot.lane.b32.xlu0 %v334, 16
    %v342 = vpop.permute.xlu0 %341
    %343 = vrot.lane.b32.xlu0 %v335, 16
    %v344 = vpop.permute.xlu0 %343
    %v345 = vsel %vm74, %v340, %v342
    %v346 = vsel %vm74, %v342, %v344
    %v350 = vmul.f32 %v24, %v340
    %v351 = vmul.f32 %v25, %v345
    %v352 = vmul.f32 %v26, %v346
    %v353 = vmul.f32 %v350, %v340
    %v354 = vmul.f32 %v351, %v345
    %v355 = vmul.f32 %v352, %v346
    %359 = vrot.lane.b32.xlu0 %v353, 95
    %v360 = vpop.permute.xlu0 %359
    %361 = vrot.lane.b32.xlu0 %v354, 95
    %v362 = vpop.permute.xlu0 %361
    %363 = vrot.lane.b32.xlu0 %v355, 95
    %v364 = vpop.permute.xlu0 %363
    %vm365 = vcmask 777216
    %v366 = vsel %vm365, %v360, %v362
    %v367 = vsel %vm365, %v362, %v364
    %v370 = vadd.f32 %v320, %v366
    %v371 = vadd.f32 %v321, %v367
    %372 = vrot.lane.b32.xlu0 %v21, 111
    %v373 = vpop.permute.xlu0 %372
    %374 = vrot.lane.b32.xlu0 %v22, 111
    %v375 = vpop.permute.xlu0 %374
    %376 = vrot.lane.b32.xlu0 %v23, 111
    %v377 = vpop.permute.xlu0 %376
    %v378 = vsel %vm54, %v373, %v375
    %v379 = vsel %vm54, %v375, %v377
    %v383 = vsub.f32 %v21, %v378
    %v384 = vsub.f32 %v22, %v379
    %v385 = vsub.f32 %v23, %v377
    %389 = vrot.lane.b32.xlu0 %v383, 17
    %v390 = vpop.permute.xlu0 %389
    %391 = vrot.lane.b32.xlu0 %v384, 17
    %v392 = vpop.permute.xlu0 %391
    %393 = vrot.lane.b32.xlu0 %v385, 17
    %v394 = vpop.permute.xlu0 %393
    %v395 = vsel %vm37, %v390, %v392
    %v396 = vsel %vm37, %v392, %v394
    %v400 = vmul.f32 %v24, %v390
    %v401 = vmul.f32 %v25, %v395
    %v402 = vmul.f32 %v26, %v396
    %v403 = vmul.f32 %v400, %v390
    %v404 = vmul.f32 %v401, %v395
    %v405 = vmul.f32 %v402, %v396
    %409 = vrot.lane.b32.xlu0 %v403, 94
    %v410 = vpop.permute.xlu0 %409
    %411 = vrot.lane.b32.xlu0 %v404, 94
    %v412 = vpop.permute.xlu0 %411
    %413 = vrot.lane.b32.xlu0 %v405, 94
    %v414 = vpop.permute.xlu0 %413
    %vm415 = vcmask 769024
    %v416 = vsel %vm415, %v410, %v412
    %v417 = vsel %vm415, %v412, %v414
    %v420 = vadd.f32 %v370, %v416
    %v421 = vadd.f32 %v371, %v417
    %v422 = vld [vmem:[#allocation2] sm:$0xff]
    %v423 = vld [vmem:[#allocation2 + $0x8] sm:$0xff]
    %v424 = vld [vmem:[%s2] sm:$0x3]
    %v426 = vlaneseq
    %v427 = vshrl.u32 %v426, 7
    %v428 = vsub.s32 0, %v427
    %v429 = vrot.slane %v424, %v428
    %v430 = vlaneseq
    %v431 = vshrl.u32 %v430, 7
    %v432 = vsub.s32 1, %v431
    %v433 = vrot.slane %v424, %v432
    %439 = vrot.lane.b32.xlu0 %v24, 111
    %v440 = vpop.permute.xlu0 %439
    %441 = vrot.lane.b32.xlu0 %v25, 111
    %v442 = vpop.permute.xlu0 %441
    %443 = vrot.lane.b32.xlu0 %v26, 111
    %v444 = vpop.permute.xlu0 %443
    %v445 = vsel %vm54, %v440, %v442
    %v446 = vsel %vm54, %v442, %v444
    %v449 = vmul.f32 %v429, %v445
    %v450 = vmul.f32 %v433, %v446
    %v451 = vmul.f32 %v449, %v420
    %v452 = vmul.f32 %v450, %v421
    %v453 = vadd.f32 %v422, %v451
    %v454 = vadd.f32 %v423, %v452
    %455 = vst [vmem:[#allocation2] sm:$0xff] %v453
    %456 = vst [vmem:[#allocation2 + $0x8] sm:$0xff] %v454
    // Predicated region
    $region18: #{local_smooth_loss.1} parent=1 // pred_check
      %p457 = pneg %p15
    $region19: #{local_smooth_loss.1} parent=1 // pred_check_branch
      %459 = sbr.rel (%p457) target = $region21
    $region20: #{local_smooth_loss.1} parent=1 // pred_region
      %v460 = vld [vmem:[#allocation2] sm:$0xff]
      %v461 = vld [vmem:[#allocation2 + $0x8] sm:$0xff]
      %v462 = vadd.f32 %v460, %v461
      %463 = vadd.xlane.f32.xlu0 %v462
      %v464 = vpop.xlane.xlu0 %463
      %v465 = vrot.slane %v464, 4
      %v466 = vadd.f32 %v464, %v465
      %v467 = vrot.slane %v466, 2
      %v468 = vadd.f32 %v466, %v467
      %v469 = vrot.slane %v468, 1
      %v470 = vadd.f32 %v468, %v469
      %s471 = vtos %v470
      %v472 = vstv %s471
      %vm473 = vcmask 0
      %474 = vst.msk [vmem:[#allocation3] sm:$0x1] %vm473, %v472
    $region21: #{local_smooth_loss.1} parent=1 // pred_fallthru
      _
    // Predicated region
    $region22: #{local_smooth_loss.1} parent=1 // pred_check
      _
    $region23: #{local_smooth_loss.1} parent=1 // pred_check_branch
      %476 = sbr.rel (0) target = $region25
    $region24: #{local_smooth_loss.1} parent=1 // pred_region
      %s478 = ssub.s32 16, 16
      %479 = vsyncadd [#allocation4], %s478
      %s481 = sshll.u32 [#allocation3], 4
      %s482 = int_to_ptr.vmem [resolvable:$true] %s481
      %484 = dma.vmem_to_hbm [thread:$0]  %s482, 16, %s3, [#allocation4]
    $region25: #{local_smooth_loss.1} parent=1 // pred_fallthru
      _
    // Predicated region
    $region26: #{local_smooth_loss.1} parent=1 // pred_check
      _
    $region27: #{local_smooth_loss.1} parent=1 // pred_check_branch
      %486 = sbr.rel (0) target = $region29
    $region28: #{local_smooth_loss.1} parent=1 // pred_region
      %487 = dma.done [#allocation4], 16
    $region29: #{local_smooth_loss.1} parent=1 // pred_fallthru
      _
    %488 = vsyncpa [#allocation4], 1

</llo_original>
